<compile_context>
chip_gen: v6e
topology: v6e:2x2x1
jax: 0.10.0
libtpu: 0.0.40
codegen_flags: <defaults>
</compile_context>

<pallas_src>
import functools

import jax
import jax.numpy as jnp
from jax.experimental import pallas as pl
from jax.experimental.pallas import tpu as pltpu


def _round_up(x, m):
    return ((x + m - 1) // m) * m


# ---------------------------------------------------------------------------
# Fused Pallas kernel: entire ARMANet forward in one call
# ---------------------------------------------------------------------------
def _arma_net_fused_kernel(x_ref, prop_ref, feat_w_ref, feat_b_ref,
                           v_cat_ref, b_cat_ref, w0_cat_ref, w_bd_ref,
                           mean_ref, final_w_ref, final_b_ref, out_ref):
    num_layer, num_step = v_cat_ref.shape[0], v_cat_ref.shape[1]
    f32, bf16 = jnp.float32, jnp.bfloat16

    prop = prop_ref[...]                                   # [N, N] bf16

    # feat_encoder: Linear(F -> H)   (dropout is identity in eval mode)
    h = jnp.dot(x_ref[...].astype(bf16), feat_w_ref[...],
                preferred_element_type=f32) + feat_b_ref[...]           # [N,H] f32

    # L and T are tiny here -> static unrolled loops.
    # TODO(synk): for large T / L switch to lax.fori_loop(..., unroll=True) with
    #             dynamic v_cat/w_bd indexing to bound code size and live ranges.
    for li in range(num_layer):
        h_b = h.astype(bf16)

        # ---- t = 0: every stack starts from the same h, so one [N,H]@[H,SHp]
        #      matmul handles all stacks at once (w0_cat is the horizontally
        #      concatenated W[:, :, 0], zero-padded to 128 lanes).
        root = jnp.dot(h_b, v_cat_ref[li, 0], preferred_element_type=f32) \
            + b_cat_ref[li, 0]                                          # [N,SHp]
        ph = jnp.dot(prop, h_b, preferred_element_type=f32)             # [N,H]
        state = jnp.maximum(
            jnp.dot(ph.astype(bf16), w0_cat_ref[li],
                    preferred_element_type=f32) + root, 0.0)            # [N,SHp]

        # ---- t >= 1: stacks stay concatenated on the (padded) lane axis and
        #      evolve via a block-diagonal weight; root is computed per step.
        for t in range(1, num_step):
            root = jnp.dot(h_b, v_cat_ref[li, t], preferred_element_type=f32) \
                + b_cat_ref[li, t]                                      # [N,SHp]
            ph = jnp.dot(prop, state.astype(bf16), preferred_element_type=f32)
            z = jnp.dot(ph.astype(bf16), w_bd_ref[li, t - 1],
                        preferred_element_type=f32)
            state = jnp.maximum(z + root, 0.0)

        # ---- stack mean on the MXU (stacked (1/S)*I_H blocks) + outer ReLU.
        h = jnp.maximum(
            jnp.dot(state.astype(bf16), mean_ref[...],
                    preferred_element_type=f32), 0.0)                   # [N,H]

    # final_encoder: Linear(H -> C), lane-dense padded to Cp.
    out = jnp.dot(h.astype(bf16), final_w_ref[...],
                  preferred_element_type=f32) + final_b_ref[...]
    out_ref[...] = out.astype(out_ref.dtype)


def arma_net_forward(x, prop, kparams, *, num_classes):
    """Single fused pallas_call for the whole ARMANet forward."""
    n_nodes = x.shape[0]
    cp = kparams["final_w"].shape[1]                        # lane-padded classes
    args = (x, prop.astype(jnp.bfloat16),
            kparams["feat_w"], kparams["feat_b"],
            kparams["v_cat"], kparams["b_cat"],
            kparams["w0_cat"], kparams["w_bd"],
            kparams["mean_mat"],
            kparams["final_w"], kparams["final_b"])
    out_shape = jax.ShapeDtypeStruct((n_nodes, cp), x.dtype)

    # Size the scoped VMEM limit from the actual resident set (default scoped
    # limit is 16/32 MiB depending on chip, not the physical capacity).
    total_bytes = sum(a.size * a.dtype.itemsize for a in args)
    total_bytes += n_nodes * cp * x.dtype.itemsize
    vmem_limit = int(min(max(2 * total_bytes + (16 << 20), 32 << 20), 100 << 20))

    vmem = pl.BlockSpec(memory_space=pltpu.MemorySpace.VMEM)
    out_padded = pl.pallas_call(
        _arma_net_fused_kernel,
        out_shape=out_shape,
        in_specs=[vmem] * len(args),
        out_specs=vmem,
        compiler_params=pltpu.CompilerParams(vmem_limit_bytes=vmem_limit),
    )(*args)
    return out_padded[:, :num_classes]


# ---------------------------------------------------------------------------
# Parameter construction / kernel-layout preparation (pure JAX, one-time)
# ---------------------------------------------------------------------------
def build_params(key, num_features, num_classes, hidden_dim, num_layer,
                 stack_num, stack_layer_num):
    def uni(k, shape, fan_in):
        lim = float(fan_in) ** -0.5
        return jax.random.uniform(k, shape, jnp.float32, -lim, lim)

    ks = jax.random.split(key, 7)
    feat_w = uni(ks[0], (num_features, hidden_dim), num_features)
    feat_b = uni(ks[1], (1, hidden_dim), num_features)
    final_w = uni(ks[2], (hidden_dim, num_classes), hidden_dim)
    final_b = uni(ks[3], (1, num_classes), hidden_dim)
    wv_shape = (num_layer, stack_num, stack_layer_num, hidden_dim, hidden_dim)
    W = uni(ks[4], wv_shape, hidden_dim)
    V = uni(ks[5], wv_shape, hidden_dim)
    b = uni(ks[6], (num_layer, stack_num, stack_layer_num, 1, hidden_dim),
            hidden_dim)
    return {"feat_w": feat_w, "feat_b": feat_b,
            "final_w": final_w, "final_b": final_b,
            "W": W, "V": V, "b": b}


def prepare_kernel_params(params, *, lane=128):
    """Re-pack W/V/b into lane-dense (128-padded) / block-diagonal bf16 layouts."""
    W, V, B = params["W"], params["V"], params["b"]
    L, S, T, H, _ = W.shape
    SH = S * H
    SHp = _round_up(SH, lane)
    C = params["final_w"].shape[1]
    Cp = _round_up(C, lane)
    bf16 = jnp.bfloat16

    # v_cat[l, t] : [H, SHp]; column block s holds V[l, s, t]  (zero lane pad).
    v_cat = jnp.zeros((L, T, H, SHp), jnp.float32)
    v_cat = v_cat.at[..., :SH].set(
        jnp.transpose(V, (0, 2, 3, 1, 4)).reshape(L, T, H, SH))
    # b_cat[l, t] : [1, SHp]  (f32 — added after f32 accumulation).
    b_cat = jnp.zeros((L, T, 1, SHp), jnp.float32)
    b_cat = b_cat.at[..., :SH].set(
        jnp.transpose(B, (0, 2, 3, 1, 4)).reshape(L, T, 1, SH))
    # w0_cat[l] : [H, SHp]; column block s holds W[l, s, 0]  (t = 0 step).
    w0_cat = jnp.zeros((L, H, SHp), jnp.float32)
    w0_cat = w0_cat.at[..., :SH].set(
        jnp.transpose(W[:, :, 0], (0, 2, 1, 3)).reshape(L, H, SH))
    # w_bd[l, t-1] : [SHp, SHp] block-diag with W[l, s, t] for t >= 1 only
    # (the previous version's t = 0 slab was dead weight).
    w_bd = jnp.zeros((L, max(T - 1, 1), SHp, SHp), jnp.float32)
    for l in range(L):
        for t in range(1, T):
            for s in range(S):
                w_bd = w_bd.at[l, t - 1,
                               s * H:(s + 1) * H,
                               s * H:(s + 1) * H].set(W[l, s, t])
    # mean_mat : [SHp, H] = S stacked (1/S)*I_H blocks (zero sublane pad).
    # Moves the stack mean onto the MXU (1/S is exact in bf16 for S = 2).
    mean_mat = jnp.zeros((SHp, H), jnp.float32)
    eye_over_s = jnp.eye(H, dtype=jnp.float32) / S
    for s in range(S):
        mean_mat = mean_mat.at[s * H:(s + 1) * H, :].set(eye_over_s)
    # Final Linear, lane-dense padded to Cp.
    final_w = jnp.zeros((H, Cp), jnp.float32).at[:, :C].set(params["final_w"])
    final_b = jnp.zeros((1, Cp), jnp.float32).at[:, :C].set(params["final_b"])

    return {"feat_w": params["feat_w"].astype(bf16),
            "feat_b": params["feat_b"],
            "final_w": final_w.astype(bf16),
            "final_b": final_b,
            "v_cat": v_cat.astype(bf16),
            "b_cat": b_cat,
            "w0_cat": w0_cat.astype(bf16),
            "w_bd": w_bd.astype(bf16),
            "mean_mat": mean_mat.astype(bf16)}


def build_laplacian(key, n_nodes):
    # symmetric normalized Laplacian of a random graph with self-loops
    a = (jax.random.uniform(key, (n_nodes, n_nodes)) < 0.3).astype(jnp.float32)
    a = jnp.maximum(a, a.T)
    a = a + jnp.eye(n_nodes, dtype=jnp.float32)
    d = jnp.sum(a, axis=1)
    dinv = 1.0 / jnp.sqrt(d)
    a_hat = dinv[:, None] * a * dinv[None, :]
    return jnp.eye(n_nodes, dtype=jnp.float32) - a_hat


# ---------------------------------------------------------------------------
# Pure-JAX f32 reference (mirrors the PyTorch module directly) for verification
# ---------------------------------------------------------------------------
def arma_net_reference(x, prop, params, *, num_layer, stack_num, stack_layer_num):
    h = x @ params["feat_w"] + params["feat_b"]
    W, V, B = params["W"], params["V"], params["b"]
    for l in range(num_layer):
        outs = []
        for s in range(stack_num):
            hk = h
            for t in range(stack_layer_num):
                hk = jax.nn.relu(prop @ hk @ W[l, s, t] + h @ V[l, s, t] + B[l, s, t])
            outs.append(hk)
        h = jax.nn.relu(sum(outs) / stack_num)
    return h @ params["final_w"] + params["final_b"]


# ---------------------------------------------------------------------------
if __name__ == "__main__":
    # small shapes consistent with the module's forward
    n_nodes = 16
    num_features = 16
    hidden_dim = 32
    num_classes = 8
    num_layer = 2
    stack_num = 2
    stack_layer_num = 2

    key = jax.random.PRNGKey(0)
    k_x, k_p, k_l = jax.random.split(key, 3)

    x = jax.random.normal(k_x, (n_nodes, num_features), jnp.float32)
    laplacian = build_laplacian(k_l, n_nodes)
    prop = jnp.eye(n_nodes, dtype=jnp.float32) - laplacian   # P = I - L

    params = build_params(k_p, num_features, num_classes, hidden_dim,
                          num_layer, stack_num, stack_layer_num)
    kparams = prepare_kernel_params(params)

    fwd = jax.jit(functools.partial(arma_net_forward, num_classes=num_classes))
    out = fwd(x, prop, kparams)
    jax.block_until_ready(out)

    ref = arma_net_reference(x, prop, params, num_layer=num_layer,
                             stack_num=stack_num,
                             stack_layer_num=stack_layer_num)

    assert out.shape == (n_nodes, num_classes)
    assert jnp.all(jnp.isfinite(out))
    # bf16 MXU operands (f32 accumulation) -> tolerance loosened vs f32 reference.
    assert jnp.allclose(out, ref, atol=5e-2, rtol=5e-2), \
        float(jnp.max(jnp.abs(out - ref)))
    print("KERNEL_OK")
</pallas_src>

<mosaic_0001>
module attributes {stable_mosaic.version = 11 : i64} {
  func.func @_arma_net_fused_kernel(%arg0: memref<16x16xf32, #tpu.memory_space<vmem>>, %arg1: memref<16x16xbf16, #tpu.memory_space<vmem>>, %arg2: memref<16x32xbf16, #tpu.memory_space<vmem>>, %arg3: memref<1x32xf32, #tpu.memory_space<vmem>>, %arg4: memref<2x2x32x128xbf16, #tpu.memory_space<vmem>>, %arg5: memref<2x2x1x128xf32, #tpu.memory_space<vmem>>, %arg6: memref<2x32x128xbf16, #tpu.memory_space<vmem>>, %arg7: memref<2x1x128x128xbf16, #tpu.memory_space<vmem>>, %arg8: memref<128x32xbf16, #tpu.memory_space<vmem>>, %arg9: memref<32x128xbf16, #tpu.memory_space<vmem>>, %arg10: memref<1x128xf32, #tpu.memory_space<vmem>>, %arg11: memref<16x128xf32, #tpu.memory_space<vmem>>) attributes {dimension_semantics = [], scalar_prefetch = 0 : i64, scratch_operands = 0 : i64, tpu.core_type = #tpu.core_type<tc>} {
    %c0 = arith.constant 0 : index
    %c0_0 = arith.constant 0 : index
    %0 = vector.load %arg1[%c0, %c0_0] : memref<16x16xbf16, #tpu.memory_space<vmem>>, vector<16x16xbf16>
    %c0_1 = arith.constant 0 : index
    %c0_2 = arith.constant 0 : index
    %1 = vector.load %arg0[%c0_1, %c0_2] : memref<16x16xf32, #tpu.memory_space<vmem>>, vector<16x16xf32>
    %2 = arith.truncf %1 : vector<16x16xf32> to vector<16x16xbf16>
    %c0_3 = arith.constant 0 : index
    %c0_4 = arith.constant 0 : index
    %3 = vector.load %arg2[%c0_3, %c0_4] : memref<16x32xbf16, #tpu.memory_space<vmem>>, vector<16x32xbf16>
    %cst = arith.constant dense<0.000000e+00> : vector<16x32xf32>
    %4 = tpu.matmul %2, %3, %cst {dimension_numbers = #tpu.dot_dimension_numbers<[1], [0], [0], [1], [0, 0, 1, 1], [], []>} : vector<16x16xbf16>, vector<16x32xbf16>, vector<16x32xf32> -> vector<16x32xf32>
    %c0_5 = arith.constant 0 : index
    %c0_6 = arith.constant 0 : index
    %5 = vector.load %arg3[%c0_5, %c0_6] : memref<1x32xf32, #tpu.memory_space<vmem>>, vector<1x32xf32>
    %6 = vector.broadcast %5 : vector<1x32xf32> to vector<16x32xf32>
    %7 = arith.addf %4, %6 : vector<16x32xf32>
    %8 = arith.truncf %7 : vector<16x32xf32> to vector<16x32xbf16>
    %c0_7 = arith.constant 0 : index
    %c0_8 = arith.constant 0 : index
    %c0_9 = arith.constant 0 : index
    %c0_10 = arith.constant 0 : index
    %9 = vector.load %arg4[%c0_7, %c0_8, %c0_9, %c0_10] : memref<2x2x32x128xbf16, #tpu.memory_space<vmem>>, vector<1x1x32x128xbf16>
    %10 = vector.shape_cast %9 : vector<1x1x32x128xbf16> to vector<32x128xbf16>
    %cst_11 = arith.constant dense<0.000000e+00> : vector<16x128xf32>
    %11 = tpu.matmul %8, %10, %cst_11 {dimension_numbers = #tpu.dot_dimension_numbers<[1], [0], [0], [1], [0, 0, 1, 1], [], []>} : vector<16x32xbf16>, vector<32x128xbf16>, vector<16x128xf32> -> vector<16x128xf32>
    %c0_12 = arith.constant 0 : index
    %c0_13 = arith.constant 0 : index
    %c0_14 = arith.constant 0 : index
    %c0_15 = arith.constant 0 : index
    %12 = vector.load %arg5[%c0_12, %c0_13, %c0_14, %c0_15] : memref<2x2x1x128xf32, #tpu.memory_space<vmem>>, vector<1x1x1x128xf32>
    %13 = vector.shape_cast %12 : vector<1x1x1x128xf32> to vector<1x128xf32>
    %14 = vector.broadcast %13 : vector<1x128xf32> to vector<16x128xf32>
    %15 = arith.addf %11, %14 : vector<16x128xf32>
    %cst_16 = arith.constant dense<0.000000e+00> : vector<16x32xf32>
    %16 = tpu.matmul %0, %8, %cst_16 {dimension_numbers = #tpu.dot_dimension_numbers<[1], [0], [0], [1], [0, 0, 1, 1], [], []>} : vector<16x16xbf16>, vector<16x32xbf16>, vector<16x32xf32> -> vector<16x32xf32>
    %17 = arith.truncf %16 : vector<16x32xf32> to vector<16x32xbf16>
    %c0_17 = arith.constant 0 : index
    %c0_18 = arith.constant 0 : index
    %c0_19 = arith.constant 0 : index
    %18 = vector.load %arg6[%c0_17, %c0_18, %c0_19] : memref<2x32x128xbf16, #tpu.memory_space<vmem>>, vector<1x32x128xbf16>
    %19 = vector.shape_cast %18 : vector<1x32x128xbf16> to vector<32x128xbf16>
    %cst_20 = arith.constant dense<0.000000e+00> : vector<16x128xf32>
    %20 = tpu.matmul %17, %19, %cst_20 {dimension_numbers = #tpu.dot_dimension_numbers<[1], [0], [0], [1], [0, 0, 1, 1], [], []>} : vector<16x32xbf16>, vector<32x128xbf16>, vector<16x128xf32> -> vector<16x128xf32>
    %21 = arith.addf %20, %15 : vector<16x128xf32>
    %cst_21 = arith.constant 0.000000e+00 : f32
    %22 = vector.broadcast %cst_21 : f32 to vector<16x128xf32>
    %23 = arith.maximumf %21, %22 : vector<16x128xf32>
    %c0_22 = arith.constant 0 : index
    %c1 = arith.constant 1 : index
    %c0_23 = arith.constant 0 : index
    %c0_24 = arith.constant 0 : index
    %24 = vector.load %arg4[%c0_22, %c1, %c0_23, %c0_24] : memref<2x2x32x128xbf16, #tpu.memory_space<vmem>>, vector<1x1x32x128xbf16>
    %25 = vector.shape_cast %24 : vector<1x1x32x128xbf16> to vector<32x128xbf16>
    %cst_25 = arith.constant dense<0.000000e+00> : vector<16x128xf32>
    %26 = tpu.matmul %8, %25, %cst_25 {dimension_numbers = #tpu.dot_dimension_numbers<[1], [0], [0], [1], [0, 0, 1, 1], [], []>} : vector<16x32xbf16>, vector<32x128xbf16>, vector<16x128xf32> -> vector<16x128xf32>
    %c0_26 = arith.constant 0 : index
    %c1_27 = arith.constant 1 : index
    %c0_28 = arith.constant 0 : index
    %c0_29 = arith.constant 0 : index
    %27 = vector.load %arg5[%c0_26, %c1_27, %c0_28, %c0_29] : memref<2x2x1x128xf32, #tpu.memory_space<vmem>>, vector<1x1x1x128xf32>
    %28 = vector.shape_cast %27 : vector<1x1x1x128xf32> to vector<1x128xf32>
    %29 = vector.broadcast %28 : vector<1x128xf32> to vector<16x128xf32>
    %30 = arith.addf %26, %29 : vector<16x128xf32>
    %31 = arith.truncf %23 : vector<16x128xf32> to vector<16x128xbf16>
    %cst_30 = arith.constant dense<0.000000e+00> : vector<16x128xf32>
    %32 = tpu.matmul %0, %31, %cst_30 {dimension_numbers = #tpu.dot_dimension_numbers<[1], [0], [0], [1], [0, 0, 1, 1], [], []>} : vector<16x16xbf16>, vector<16x128xbf16>, vector<16x128xf32> -> vector<16x128xf32>
    %33 = arith.truncf %32 : vector<16x128xf32> to vector<16x128xbf16>
    %c0_31 = arith.constant 0 : index
    %c0_32 = arith.constant 0 : index
    %c0_33 = arith.constant 0 : index
    %c0_34 = arith.constant 0 : index
    %34 = vector.load %arg7[%c0_31, %c0_32, %c0_33, %c0_34] : memref<2x1x128x128xbf16, #tpu.memory_space<vmem>>, vector<1x1x128x128xbf16>
    %35 = vector.shape_cast %34 : vector<1x1x128x128xbf16> to vector<128x128xbf16>
    %cst_35 = arith.constant dense<0.000000e+00> : vector<16x128xf32>
    %36 = tpu.matmul %33, %35, %cst_35 {dimension_numbers = #tpu.dot_dimension_numbers<[1], [0], [0], [1], [0, 0, 1, 1], [], []>} : vector<16x128xbf16>, vector<128x128xbf16>, vector<16x128xf32> -> vector<16x128xf32>
    %37 = arith.addf %36, %30 : vector<16x128xf32>
    %cst_36 = arith.constant 0.000000e+00 : f32
    %38 = vector.broadcast %cst_36 : f32 to vector<16x128xf32>
    %39 = arith.maximumf %37, %38 : vector<16x128xf32>
    %40 = arith.truncf %39 : vector<16x128xf32> to vector<16x128xbf16>
    %c0_37 = arith.constant 0 : index
    %c0_38 = arith.constant 0 : index
    %41 = vector.load %arg8[%c0_37, %c0_38] : memref<128x32xbf16, #tpu.memory_space<vmem>>, vector<128x32xbf16>
    %cst_39 = arith.constant dense<0.000000e+00> : vector<16x32xf32>
    %42 = tpu.matmul %40, %41, %cst_39 {dimension_numbers = #tpu.dot_dimension_numbers<[1], [0], [0], [1], [0, 0, 1, 1], [], []>} : vector<16x128xbf16>, vector<128x32xbf16>, vector<16x32xf32> -> vector<16x32xf32>
    %cst_40 = arith.constant 0.000000e+00 : f32
    %43 = vector.broadcast %cst_40 : f32 to vector<16x32xf32>
    %44 = arith.maximumf %42, %43 : vector<16x32xf32>
    %45 = arith.truncf %44 : vector<16x32xf32> to vector<16x32xbf16>
    %c1_41 = arith.constant 1 : index
    %c0_42 = arith.constant 0 : index
    %c0_43 = arith.constant 0 : index
    %c0_44 = arith.constant 0 : index
    %46 = vector.load %arg4[%c1_41, %c0_42, %c0_43, %c0_44] : memref<2x2x32x128xbf16, #tpu.memory_space<vmem>>, vector<1x1x32x128xbf16>
    %47 = vector.shape_cast %46 : vector<1x1x32x128xbf16> to vector<32x128xbf16>
    %cst_45 = arith.constant dense<0.000000e+00> : vector<16x128xf32>
    %48 = tpu.matmul %45, %47, %cst_45 {dimension_numbers = #tpu.dot_dimension_numbers<[1], [0], [0], [1], [0, 0, 1, 1], [], []>} : vector<16x32xbf16>, vector<32x128xbf16>, vector<16x128xf32> -> vector<16x128xf32>
    %c1_46 = arith.constant 1 : index
    %c0_47 = arith.constant 0 : index
    %c0_48 = arith.constant 0 : index
    %c0_49 = arith.constant 0 : index
    %49 = vector.load %arg5[%c1_46, %c0_47, %c0_48, %c0_49] : memref<2x2x1x128xf32, #tpu.memory_space<vmem>>, vector<1x1x1x128xf32>
    %50 = vector.shape_cast %49 : vector<1x1x1x128xf32> to vector<1x128xf32>
    %51 = vector.broadcast %50 : vector<1x128xf32> to vector<16x128xf32>
    %52 = arith.addf %48, %51 : vector<16x128xf32>
    %cst_50 = arith.constant dense<0.000000e+00> : vector<16x32xf32>
    %53 = tpu.matmul %0, %45, %cst_50 {dimension_numbers = #tpu.dot_dimension_numbers<[1], [0], [0], [1], [0, 0, 1, 1], [], []>} : vector<16x16xbf16>, vector<16x32xbf16>, vector<16x32xf32> -> vector<16x32xf32>
    %54 = arith.truncf %53 : vector<16x32xf32> to vector<16x32xbf16>
    %c1_51 = arith.constant 1 : index
    %c0_52 = arith.constant 0 : index
    %c0_53 = arith.constant 0 : index
    %55 = vector.load %arg6[%c1_51, %c0_52, %c0_53] : memref<2x32x128xbf16, #tpu.memory_space<vmem>>, vector<1x32x128xbf16>
    %56 = vector.shape_cast %55 : vector<1x32x128xbf16> to vector<32x128xbf16>
    %cst_54 = arith.constant dense<0.000000e+00> : vector<16x128xf32>
    %57 = tpu.matmul %54, %56, %cst_54 {dimension_numbers = #tpu.dot_dimension_numbers<[1], [0], [0], [1], [0, 0, 1, 1], [], []>} : vector<16x32xbf16>, vector<32x128xbf16>, vector<16x128xf32> -> vector<16x128xf32>
    %58 = arith.addf %57, %52 : vector<16x128xf32>
    %cst_55 = arith.constant 0.000000e+00 : f32
    %59 = vector.broadcast %cst_55 : f32 to vector<16x128xf32>
    %60 = arith.maximumf %58, %59 : vector<16x128xf32>
    %c1_56 = arith.constant 1 : index
    %c1_57 = arith.constant 1 : index
    %c0_58 = arith.constant 0 : index
    %c0_59 = arith.constant 0 : index
    %61 = vector.load %arg4[%c1_56, %c1_57, %c0_58, %c0_59] : memref<2x2x32x128xbf16, #tpu.memory_space<vmem>>, vector<1x1x32x128xbf16>
    %62 = vector.shape_cast %61 : vector<1x1x32x128xbf16> to vector<32x128xbf16>
    %cst_60 = arith.constant dense<0.000000e+00> : vector<16x128xf32>
    %63 = tpu.matmul %45, %62, %cst_60 {dimension_numbers = #tpu.dot_dimension_numbers<[1], [0], [0], [1], [0, 0, 1, 1], [], []>} : vector<16x32xbf16>, vector<32x128xbf16>, vector<16x128xf32> -> vector<16x128xf32>
    %c1_61 = arith.constant 1 : index
    %c1_62 = arith.constant 1 : index
    %c0_63 = arith.constant 0 : index
    %c0_64 = arith.constant 0 : index
    %64 = vector.load %arg5[%c1_61, %c1_62, %c0_63, %c0_64] : memref<2x2x1x128xf32, #tpu.memory_space<vmem>>, vector<1x1x1x128xf32>
    %65 = vector.shape_cast %64 : vector<1x1x1x128xf32> to vector<1x128xf32>
    %66 = vector.broadcast %65 : vector<1x128xf32> to vector<16x128xf32>
    %67 = arith.addf %63, %66 : vector<16x128xf32>
    %68 = arith.truncf %60 : vector<16x128xf32> to vector<16x128xbf16>
    %cst_65 = arith.constant dense<0.000000e+00> : vector<16x128xf32>
    %69 = tpu.matmul %0, %68, %cst_65 {dimension_numbers = #tpu.dot_dimension_numbers<[1], [0], [0], [1], [0, 0, 1, 1], [], []>} : vector<16x16xbf16>, vector<16x128xbf16>, vector<16x128xf32> -> vector<16x128xf32>
    %70 = arith.truncf %69 : vector<16x128xf32> to vector<16x128xbf16>
    %c1_66 = arith.constant 1 : index
    %c0_67 = arith.constant 0 : index
    %c0_68 = arith.constant 0 : index
    %c0_69 = arith.constant 0 : index
    %71 = vector.load %arg7[%c1_66, %c0_67, %c0_68, %c0_69] : memref<2x1x128x128xbf16, #tpu.memory_space<vmem>>, vector<1x1x128x128xbf16>
    %72 = vector.shape_cast %71 : vector<1x1x128x128xbf16> to vector<128x128xbf16>
    %cst_70 = arith.constant dense<0.000000e+00> : vector<16x128xf32>
    %73 = tpu.matmul %70, %72, %cst_70 {dimension_numbers = #tpu.dot_dimension_numbers<[1], [0], [0], [1], [0, 0, 1, 1], [], []>} : vector<16x128xbf16>, vector<128x128xbf16>, vector<16x128xf32> -> vector<16x128xf32>
    %74 = arith.addf %73, %67 : vector<16x128xf32>
    %cst_71 = arith.constant 0.000000e+00 : f32
    %75 = vector.broadcast %cst_71 : f32 to vector<16x128xf32>
    %76 = arith.maximumf %74, %75 : vector<16x128xf32>
    %77 = arith.truncf %76 : vector<16x128xf32> to vector<16x128xbf16>
    %c0_72 = arith.constant 0 : index
    %c0_73 = arith.constant 0 : index
    %78 = vector.load %arg8[%c0_72, %c0_73] : memref<128x32xbf16, #tpu.memory_space<vmem>>, vector<128x32xbf16>
    %cst_74 = arith.constant dense<0.000000e+00> : vector<16x32xf32>
    %79 = tpu.matmul %77, %78, %cst_74 {dimension_numbers = #tpu.dot_dimension_numbers<[1], [0], [0], [1], [0, 0, 1, 1], [], []>} : vector<16x128xbf16>, vector<128x32xbf16>, vector<16x32xf32> -> vector<16x32xf32>
    %cst_75 = arith.constant 0.000000e+00 : f32
    %80 = vector.broadcast %cst_75 : f32 to vector<16x32xf32>
    %81 = arith.maximumf %79, %80 : vector<16x32xf32>
    %82 = arith.truncf %81 : vector<16x32xf32> to vector<16x32xbf16>
    %c0_76 = arith.constant 0 : index
    %c0_77 = arith.constant 0 : index
    %83 = vector.load %arg9[%c0_76, %c0_77] : memref<32x128xbf16, #tpu.memory_space<vmem>>, vector<32x128xbf16>
    %cst_78 = arith.constant dense<0.000000e+00> : vector<16x128xf32>
    %84 = tpu.matmul %82, %83, %cst_78 {dimension_numbers = #tpu.dot_dimension_numbers<[1], [0], [0], [1], [0, 0, 1, 1], [], []>} : vector<16x32xbf16>, vector<32x128xbf16>, vector<16x128xf32> -> vector<16x128xf32>
    %c0_79 = arith.constant 0 : index
    %c0_80 = arith.constant 0 : index
    %85 = vector.load %arg10[%c0_79, %c0_80] : memref<1x128xf32, #tpu.memory_space<vmem>>, vector<1x128xf32>
    %86 = vector.broadcast %85 : vector<1x128xf32> to vector<16x128xf32>
    %87 = arith.addf %84, %86 : vector<16x128xf32>
    %c0_81 = arith.constant 0 : index
    %c0_82 = arith.constant 0 : index
    %88 = vector.load %arg11[%c0_81, %c0_82] : memref<16x128xf32, #tpu.memory_space<vmem>>, vector<16x128xf32>
    tpu.vector_store %arg11[%c0_81, %c0_82], %87 {strides = array<i32>} : memref<16x128xf32, #tpu.memory_space<vmem>>, vector<16x128xf32>,
    return
  }
}

</mosaic_0001>

<llo_original>
// kernel: arma_net_forward.1
$region0: #{arma_net_forward.1}
  #allocation0 [shape = 'u32[]', space=smem, size = 0x4, offset = 0x4, fixed_abs, tag = 'smem constant byte address 0x4 - core index']
  #allocation1 [shape = 'u32[144,128]{1,0:T(1,128)}', space=vmem, size = 0x12000, scoped, tag = 'internal scratch']
  %s0 = inlined_call_operand.vmem [shape: f32[16,16], index: 0, kind: input, shape index: {}]
  %s1 = inlined_call_operand.vmem [shape: bf16[16,16], index: 1, kind: input, shape index: {}]
  %s2 = inlined_call_operand.hbm [shape: bf16[16,32], index: 2, kind: input, shape index: {}]
  %s3 = inlined_call_operand.vmem [shape: f32[1,32], index: 3, kind: input, shape index: {}]
  %s4 = inlined_call_operand.vmem [shape: bf16[2,2,32,128], index: 4, kind: input, shape index: {}]
  %s5 = inlined_call_operand.vmem [shape: f32[2,2,1,128], index: 5, kind: input, shape index: {}]
  %s6 = inlined_call_operand.vmem [shape: bf16[2,32,128], index: 6, kind: input, shape index: {}]
  %s7 = inlined_call_operand.hbm [shape: bf16[2,1,128,128], index: 7, kind: input, shape index: {}]
  %s8 = inlined_call_operand.vmem [shape: bf16[128,32], index: 8, kind: input, shape index: {}]
  %s9 = inlined_call_operand.hbm [shape: bf16[32,128], index: 9, kind: input, shape index: {}]
  %s10 = inlined_call_operand.vmem [shape: f32[1,128], index: 10, kind: input, shape index: {}]
  %s11 = inlined_call_operand.vmem [shape: f32[16,128], index: 11, kind: output, shape index: {}]
  %s12 = sld [smem:[#allocation0]]
  $region66: #{arma_net_forward.1} parent=0
    _
  %s14 = ssub.s32 1, %s12
  %s15 = scalar_select 0, %s14, %s12
  $region1: #{arma_net_forward.1} parent=0
    #allocation2 [shape = 'u8[4096]{0}', space=vmem, size = 0x1000, scoped, tag = 'input window, operand 2, single buffered']
    #allocation3 [shape = 's32[1]{0}', space=sflag, size = 0x4, scoped, tag = 'scoped memory for arma_net_forward.1']
    #allocation4 [shape = 'u8[65536]{0}', space=vmem, size = 0x10000, scoped, tag = 'input window, operand 7, single buffered']
    #allocation5 [shape = 's32[1]{0}', space=sflag, size = 0x4, scoped, tag = 'scoped memory for arma_net_forward.1']
    #allocation6 [shape = 'u8[8192]{0}', space=vmem, size = 0x2000, scoped, tag = 'input window, operand 9, single buffered']
    %16 = vsyncpa [#allocation3], 0
    %17 = vsyncpa [#allocation5], 0
    // Predicated region
    $region2: #{arma_net_forward.1} parent=1 // pred_check
      _
    $region3: #{arma_net_forward.1} parent=1 // pred_check_branch
      %19 = sbr.rel (0) target = $region5
    $region4: #{arma_net_forward.1} parent=1 // pred_region
      _
    $region5: #{arma_net_forward.1} parent=1 // pred_fallthru
      _
    // Predicated region
    $region6: #{arma_net_forward.1} parent=1 // pred_check
      _
    $region7: #{arma_net_forward.1} parent=1 // pred_check_branch
      %21 = sbr.rel (0) target = $region9
    $region8: #{arma_net_forward.1} parent=1 // pred_region
      _
    $region9: #{arma_net_forward.1} parent=1 // pred_fallthru
      _
    // Predicated region
    $region10: #{arma_net_forward.1} parent=1 // pred_check
      _
    $region11: #{arma_net_forward.1} parent=1 // pred_check_branch
      %23 = sbr.rel (0) target = $region13
    $region12: #{arma_net_forward.1} parent=1 // pred_region
      %s25 = ssub.s32 128, 128
      %26 = vsyncadd [#allocation3], %s25
      %s27 = sshll.u32 [#allocation2], 4
      %s28 = int_to_ptr.vmem [resolvable:$true] %s27
      %33 = dma.hbm_to_vmem [thread:$0]  %s2, 128, %s28, [#allocation3], 64, 64, 4
    $region13: #{arma_net_forward.1} parent=1 // pred_fallthru
      _
    // Predicated region
    $region14: #{arma_net_forward.1} parent=1 // pred_check
      _
    $region15: #{arma_net_forward.1} parent=1 // pred_check_branch
      %35 = sbr.rel (0) target = $region17
    $region16: #{arma_net_forward.1} parent=1 // pred_region
      _
    $region17: #{arma_net_forward.1} parent=1 // pred_fallthru
      _
    // Predicated region
    $region18: #{arma_net_forward.1} parent=1 // pred_check
      _
    $region19: #{arma_net_forward.1} parent=1 // pred_check_branch
      %37 = sbr.rel (0) target = $region21
    $region20: #{arma_net_forward.1} parent=1 // pred_region
      _
    $region21: #{arma_net_forward.1} parent=1 // pred_fallthru
      _
    // Predicated region
    $region22: #{arma_net_forward.1} parent=1 // pred_check
      _
    $region23: #{arma_net_forward.1} parent=1 // pred_check_branch
      %39 = sbr.rel (0) target = $region25
    $region24: #{arma_net_forward.1} parent=1 // pred_region
      _
    $region25: #{arma_net_forward.1} parent=1 // pred_fallthru
      _
    // Predicated region
    $region26: #{arma_net_forward.1} parent=1 // pred_check
      _
    $region27: #{arma_net_forward.1} parent=1 // pred_check_branch
      %41 = sbr.rel (0) target = $region29
    $region28: #{arma_net_forward.1} parent=1 // pred_region
      _
    $region29: #{arma_net_forward.1} parent=1 // pred_fallthru
      _
    // Predicated region
    $region30: #{arma_net_forward.1} parent=1 // pred_check
      _
    $region31: #{arma_net_forward.1} parent=1 // pred_check_branch
      %43 = sbr.rel (0) target = $region33
    $region32: #{arma_net_forward.1} parent=1 // pred_region
      %s45 = ssub.s32 2048, 2048
      %46 = vsyncadd [#allocation5], %s45
      %s47 = sshll.u32 [#allocation4], 4
      %s48 = int_to_ptr.vmem [resolvable:$true] %s47
      %53 = dma.hbm_to_vmem [thread:$0]  %s7, 2048, %s48, [#allocation5], 64, 64, 4
    $region33: #{arma_net_forward.1} parent=1 // pred_fallthru
      _
    // Predicated region
    $region34: #{arma_net_forward.1} parent=1 // pred_check
      _
    $region35: #{arma_net_forward.1} parent=1 // pred_check_branch
      %55 = sbr.rel (0) target = $region37
    $region36: #{arma_net_forward.1} parent=1 // pred_region
      _
    $region37: #{arma_net_forward.1} parent=1 // pred_fallthru
      _
    // Predicated region
    $region38: #{arma_net_forward.1} parent=1 // pred_check
      _
    $region39: #{arma_net_forward.1} parent=1 // pred_check_branch
      %57 = sbr.rel (0) target = $region41
    $region40: #{arma_net_forward.1} parent=1 // pred_region
      %s59 = ssub.s32 256, 256
      %60 = vsyncadd [#allocation5], %s59
      %s61 = sshll.u32 [#allocation6], 4
      %s62 = int_to_ptr.vmem [resolvable:$true] %s61
      %67 = dma.hbm_to_vmem [thread:$0]  %s9, 256, %s62, [#allocation5], 64, 64, 4
    $region41: #{arma_net_forward.1} parent=1 // pred_fallthru
      _
    // Predicated region
    $region42: #{arma_net_forward.1} parent=1 // pred_check
      _
    $region43: #{arma_net_forward.1} parent=1 // pred_check_branch
      %69 = sbr.rel (0) target = $region45
    $region44: #{arma_net_forward.1} parent=1 // pred_region
      _
    $region45: #{arma_net_forward.1} parent=1 // pred_fallthru
      _
    // Predicated region
    $region46: #{arma_net_forward.1} parent=1 // pred_check
      _
    $region47: #{arma_net_forward.1} parent=1 // pred_check_branch
      %71 = sbr.rel (0) target = $region49
    $region48: #{arma_net_forward.1} parent=1 // pred_region
      %72 = dma.done [#allocation3], 128
    $region49: #{arma_net_forward.1} parent=1 // pred_fallthru
      _
    // Predicated region
    $region50: #{arma_net_forward.1} parent=1 // pred_check
      _
    $region51: #{arma_net_forward.1} parent=1 // pred_check_branch
      %74 = sbr.rel (0) target = $region53
    $region52: #{arma_net_forward.1} parent=1 // pred_region
      %75 = dma.done [#allocation5], 2048
    $region53: #{arma_net_forward.1} parent=1 // pred_fallthru
      _
    // Predicated region
    $region54: #{arma_net_forward.1} parent=1 // pred_check
      _
    $region55: #{arma_net_forward.1} parent=1 // pred_check_branch
      %77 = sbr.rel (0) target = $region57
    $region56: #{arma_net_forward.1} parent=1 // pred_region
      %78 = dma.done [#allocation5], 256
    $region57: #{arma_net_forward.1} parent=1 // pred_fallthru
      _
    %v80 = vld [vmem:[%s1] sm:$0xf]
    %v81 = vld [vmem:[%s1 + $0x4] sm:$0xf]
    %v82 = vld [vmem:[%s0] sm:$0xff]
    %v83 = vld [vmem:[%s0 + $0x8] sm:$0xff]
    %v84 = vpack.c.bf16 %v83, %v82
    %v85 = vld [vmem:[#allocation2] sm:$0xf]
    %v86 = vld [vmem:[#allocation2 + $0x4] sm:$0xf]
    %v87 = vld [vmem:[%s3] sm:$0x1]
    %v89 = vlaneseq
    %v90 = vshrl.u32 %v89, 7
    %v91 = vsub.s32 0, %v90
    %v92 = vrot.slane %v87, %v91
    %v96 = vunpack.c.l.b16 %v85
    %v97 = vunpack.c.l.b16 %v86
    %v98 = vpack.c.b16 %v97, %v96
    %vm100 = vcmask 130048
    %v102 = vsel %vm100, %v84, 0
    %104 = vmatprep.subr.bf16.mxu0 0
    %105 = vmatpush1.bf16.msra.mxu0 0
    %106 = vmatprep.subr.bf16.mxu0 0
    %107 = vmatpush1.bf16.msra.mxu0 0
    %108 = vmatprep.subr.bf16.mxu0 0
    %109 = vmatpush1.bf16.msra.mxu0 0
    %110 = vmatprep.subr.bf16.mxu0 0
    %111 = vmatpush1.bf16.msra.mxu0 0
    %112 = vmatprep.subr.bf16.mxu0 0
    %113 = vmatpush1.bf16.msra.mxu0 0
    %114 = vmatprep.subr.bf16.mxu0 0
    %115 = vmatpush1.bf16.msra.mxu0 0
    %116 = vmatprep.subr.bf16.mxu0 0
    %117 = vmatpush1.bf16.msra.mxu0 0
    %118 = vmatprep.subr.bf16.mxu0 0
    %119 = vmatpush1.bf16.msra.mxu0 %v98
    %120 = vmatprep.subr.bf16.mxu0 0
    %121 = vmatpush2.bf16.msra.mxu0 0
    %122 = vmatprep.subr.bf16.mxu0 0
    %123 = vmatpush2.bf16.msra.mxu0 0
    %124 = vmatprep.subr.bf16.mxu0 0
    %125 = vmatpush2.bf16.msra.mxu0 0
    %126 = vmatprep.subr.bf16.mxu0 0
    %127 = vmatpush2.bf16.msra.mxu0 0
    %128 = vmatprep.subr.bf16.mxu0 0
    %129 = vmatpush2.bf16.msra.mxu0 0
    %130 = vmatprep.subr.bf16.mxu0 0
    %131 = vmatpush2.bf16.msra.mxu0 0
    %132 = vmatprep.subr.bf16.mxu0 0
    %133 = vmatpush2.bf16.msra.mxu0 0
    %134 = vmatprep.subr.bf16.mxu0 0
    %135 = vmatpush2.bf16.msra.mxu0 0
    %136 = vmatprep.mubr.bf16.mxu0 0
    %137 = vmatmul.mubr.bf16.gmra.mxu0 %v102
    %v138 = vpop.f32.mrf.mxu0
    %v139 = vadd.f32 %v92, %v138
    %v140 = vpop.f32.mrf.mxu0
    %v141 = vpop.f32.mrf.mxu0
    %v142 = vadd.f32 %v92, %v141
    %v143 = vpop.f32.mrf.mxu0
    %144 = vdwg.mxu0
    %v145 = vpack.c.bf16 %v142, %v139
    %v146 = vld [vmem:[%s4] sm:$0xf]
    %v147 = vld [vmem:[%s4 + $0x4] sm:$0xf]
    %v148 = vld [vmem:[%s4 + $0x8] sm:$0xf]
    %v149 = vld [vmem:[%s4 + $0xc] sm:$0xf]
    %v150 = vld [vmem:[%s5] sm:$0x1]
    %v152 = vlaneseq
    %v153 = vshrl.u32 %v152, 7
    %v154 = vsub.s32 0, %v153
    %v155 = vrot.slane %v150, %v154
    %v161 = vunpack.c.l.b16 %v146
    %v162 = vunpack.c.l.b16 %v147
    %v163 = vunpack.c.l.b16 %v148
    %v164 = vunpack.c.l.b16 %v149
    %v165 = vpack.c.b16 %v162, %v161
    %v166 = vpack.c.b16 %v164, %v163
    %vm169 = vcmask 261120
    %v171 = vsel %vm169, %v145, 0
    %173 = vmatprep.subr.bf16.mxu0 0
    %174 = vmatpush1.bf16.msra.mxu0 0
    %175 = vmatprep.subr.bf16.mxu0 0
    %176 = vmatpush1.bf16.msra.mxu0 0
    %177 = vmatprep.subr.bf16.mxu0 0
    %178 = vmatpush1.bf16.msra.mxu0 0
    %179 = vmatprep.subr.bf16.mxu0 0
    %180 = vmatpush1.bf16.msra.mxu0 0
    %181 = vmatprep.subr.bf16.mxu0 0
    %182 = vmatpush1.bf16.msra.mxu0 0
    %183 = vmatprep.subr.bf16.mxu0 0
    %184 = vmatpush1.bf16.msra.mxu0 0
    %185 = vmatprep.subr.bf16.mxu0 0
    %186 = vmatpush1.bf16.msra.mxu0 %v166
    %187 = vmatprep.subr.bf16.mxu0 0
    %188 = vmatpush1.bf16.msra.mxu0 %v165
    %189 = vmatprep.subr.bf16.mxu0 0
    %190 = vmatpush2.bf16.msra.mxu0 0
    %191 = vmatprep.subr.bf16.mxu0 0
    %192 = vmatpush2.bf16.msra.mxu0 0
    %193 = vmatprep.subr.bf16.mxu0 0
    %194 = vmatpush2.bf16.msra.mxu0 0
    %195 = vmatprep.subr.bf16.mxu0 0
    %196 = vmatpush2.bf16.msra.mxu0 0
    %197 = vmatprep.subr.bf16.mxu0 0
    %198 = vmatpush2.bf16.msra.mxu0 0
    %199 = vmatprep.subr.bf16.mxu0 0
    %200 = vmatpush2.bf16.msra.mxu0 0
    %201 = vmatprep.subr.bf16.mxu0 0
    %202 = vmatpush2.bf16.msra.mxu0 0
    %203 = vmatprep.subr.bf16.mxu0 0
    %204 = vmatpush2.bf16.msra.mxu0 0
    %205 = vmatprep.mubr.bf16.mxu0 0
    %206 = vmatmul.mubr.bf16.gmra.mxu0 %v171
    %v207 = vpop.f32.mrf.mxu0
    %v208 = vadd.f32 %v155, %v207
    %v209 = vpop.f32.mrf.mxu0
    %v210 = vpop.f32.mrf.mxu0
    %v211 = vadd.f32 %v155, %v210
    %v212 = vpop.f32.mrf.mxu0
    %213 = vdwg.mxu0
    %v216 = vunpack.c.l.b16 %v80
    %v217 = vunpack.c.l.b16 %v81
    %v218 = vpack.c.b16 %v217, %v216
    %v220 = vsel %vm100, %v218, 0
    %222 = vmatprep.subr.bf16.mxu0 0
    %223 = vmatpush1.bf16.msra.mxu0 0
    %224 = vmatprep.subr.bf16.mxu0 0
    %225 = vmatpush1.bf16.msra.mxu0 0
    %226 = vmatprep.subr.bf16.mxu0 0
    %227 = vmatpush1.bf16.msra.mxu0 0
    %228 = vmatprep.subr.bf16.mxu0 0
    %229 = vmatpush1.bf16.msra.mxu0 0
    %230 = vmatprep.subr.bf16.mxu0 0
    %231 = vmatpush1.bf16.msra.mxu0 0
    %232 = vmatprep.subr.bf16.mxu0 0
    %233 = vmatpush1.bf16.msra.mxu0 0
    %234 = vmatprep.subr.bf16.mxu0 0
    %235 = vmatpush1.bf16.msra.mxu0 0
    %236 = vmatprep.subr.bf16.mxu0 0
    %237 = vmatpush1.bf16.msra.mxu0 %v145
    %238 = vmatprep.subr.bf16.mxu0 0
    %239 = vmatpush2.bf16.msra.mxu0 0
    %240 = vmatprep.subr.bf16.mxu0 0
    %241 = vmatpush2.bf16.msra.mxu0 0
    %242 = vmatprep.subr.bf16.mxu0 0
    %243 = vmatpush2.bf16.msra.mxu0 0
    %244 = vmatprep.subr.bf16.mxu0 0
    %245 = vmatpush2.bf16.msra.mxu0 0
    %246 = vmatprep.subr.bf16.mxu0 0
    %247 = vmatpush2.bf16.msra.mxu0 0
    %248 = vmatprep.subr.bf16.mxu0 0
    %249 = vmatpush2.bf16.msra.mxu0 0
    %250 = vmatprep.subr.bf16.mxu0 0
    %251 = vmatpush2.bf16.msra.mxu0 0
    %252 = vmatprep.subr.bf16.mxu0 0
    %253 = vmatpush2.bf16.msra.mxu0 0
    %254 = vmatprep.mubr.bf16.mxu0 0
    %255 = vmatmul.mubr.bf16.gmra.mxu0 %v220
    %v256 = vpop.f32.mrf.mxu0
    %v257 = vadd.f32 0.0, %v256
    %v258 = vpop.f32.mrf.mxu0
    %v259 = vpop.f32.mrf.mxu0
    %v260 = vadd.f32 0.0, %v259
    %v261 = vpop.f32.mrf.mxu0
    %262 = vdwg.mxu0
    %v263 = vpack.c.bf16 %v260, %v257
    %v264 = vld [vmem:[%s6] sm:$0xf]
    %v265 = vld [vmem:[%s6 + $0x4] sm:$0xf]
    %v266 = vld [vmem:[%s6 + $0x8] sm:$0xf]
    %v267 = vld [vmem:[%s6 + $0xc] sm:$0xf]
    %v272 = vunpack.c.l.b16 %v264
    %v273 = vunpack.c.l.b16 %v265
    %v274 = vunpack.c.l.b16 %v266
    %v275 = vunpack.c.l.b16 %v267
    %v276 = vpack.c.b16 %v273, %v272
    %v277 = vpack.c.b16 %v275, %v274
    %v281 = vsel %vm169, %v263, 0
    %283 = vmatprep.subr.bf16.mxu0 0
    %284 = vmatpush1.bf16.msra.mxu0 0
    %285 = vmatprep.subr.bf16.mxu0 0
    %286 = vmatpush1.bf16.msra.mxu0 0
    %287 = vmatprep.subr.bf16.mxu0 0
    %288 = vmatpush1.bf16.msra.mxu0 0
    %289 = vmatprep.subr.bf16.mxu0 0
    %290 = vmatpush1.bf16.msra.mxu0 0
    %291 = vmatprep.subr.bf16.mxu0 0
    %292 = vmatpush1.bf16.msra.mxu0 0
    %293 = vmatprep.subr.bf16.mxu0 0
    %294 = vmatpush1.bf16.msra.mxu0 0
    %295 = vmatprep.subr.bf16.mxu0 0
    %296 = vmatpush1.bf16.msra.mxu0 %v277
    %297 = vmatprep.subr.bf16.mxu0 0
    %298 = vmatpush1.bf16.msra.mxu0 %v276
    %299 = vmatprep.subr.bf16.mxu0 0
    %300 = vmatpush2.bf16.msra.mxu0 0
    %301 = vmatprep.subr.bf16.mxu0 0
    %302 = vmatpush2.bf16.msra.mxu0 0
    %303 = vmatprep.subr.bf16.mxu0 0
    %304 = vmatpush2.bf16.msra.mxu0 0
    %305 = vmatprep.subr.bf16.mxu0 0
    %306 = vmatpush2.bf16.msra.mxu0 0
    %307 = vmatprep.subr.bf16.mxu0 0
    %308 = vmatpush2.bf16.msra.mxu0 0
    %309 = vmatprep.subr.bf16.mxu0 0
    %310 = vmatpush2.bf16.msra.mxu0 0
    %311 = vmatprep.subr.bf16.mxu0 0
    %312 = vmatpush2.bf16.msra.mxu0 0
    %313 = vmatprep.subr.bf16.mxu0 0
    %314 = vmatpush2.bf16.msra.mxu0 0
    %315 = vmatprep.mubr.bf16.mxu0 0
    %316 = vmatmul.mubr.bf16.gmra.mxu0 %v281
    %v317 = vpop.f32.mrf.mxu0
    %v318 = vadd.f32 %v208, %v317
    %v319 = vpop.f32.mrf.mxu0
    %v320 = vpop.f32.mrf.mxu0
    %v321 = vadd.f32 %v211, %v320
    %v322 = vpop.f32.mrf.mxu0
    %323 = vdwg.mxu0
    %v324 = vmax.f32 %v318, 0.0
    %v325 = vmax.f32 %v321, 0.0
    %s326 = scalar_lea.vmem %s4, 16
    %v327 = vld [vmem:[%s326] sm:$0xf]
    %v328 = vld [vmem:[%s326 + $0x4] sm:$0xf]
    %v329 = vld [vmem:[%s326 + $0x8] sm:$0xf]
    %v330 = vld [vmem:[%s326 + $0xc] sm:$0xf]
    %s331 = scalar_lea.vmem %s5, 1
    %v332 = vld [vmem:[%s331] sm:$0x1]
    %v334 = vlaneseq
    %v335 = vshrl.u32 %v334, 7
    %v336 = vsub.s32 0, %v335
    %v337 = vrot.slane %v332, %v336
    %v343 = vunpack.c.l.b16 %v327
    %v344 = vunpack.c.l.b16 %v328
    %v345 = vunpack.c.l.b16 %v329
    %v346 = vunpack.c.l.b16 %v330
    %v347 = vpack.c.b16 %v344, %v343
    %v348 = vpack.c.b16 %v346, %v345
    %351 = vmatprep.subr.bf16.mxu0 0
    %352 = vmatpush1.bf16.msra.mxu0 0
    %353 = vmatprep.subr.bf16.mxu0 0
    %354 = vmatpush1.bf16.msra.mxu0 0
    %355 = vmatprep.subr.bf16.mxu0 0
    %356 = vmatpush1.bf16.msra.mxu0 0
    %357 = vmatprep.subr.bf16.mxu0 0
    %358 = vmatpush1.bf16.msra.mxu0 0
    %359 = vmatprep.subr.bf16.mxu0 0
    %360 = vmatpush1.bf16.msra.mxu0 0
    %361 = vmatprep.subr.bf16.mxu0 0
    %362 = vmatpush1.bf16.msra.mxu0 0
    %363 = vmatprep.subr.bf16.mxu0 0
    %364 = vmatpush1.bf16.msra.mxu0 %v348
    %365 = vmatprep.subr.bf16.mxu0 0
    %366 = vmatpush1.bf16.msra.mxu0 %v347
    %367 = vmatprep.subr.bf16.mxu0 0
    %368 = vmatpush2.bf16.msra.mxu0 0
    %369 = vmatprep.subr.bf16.mxu0 0
    %370 = vmatpush2.bf16.msra.mxu0 0
    %371 = vmatprep.subr.bf16.mxu0 0
    %372 = vmatpush2.bf16.msra.mxu0 0
    %373 = vmatprep.subr.bf16.mxu0 0
    %374 = vmatpush2.bf16.msra.mxu0 0
    %375 = vmatprep.subr.bf16.mxu0 0
    %376 = vmatpush2.bf16.msra.mxu0 0
    %377 = vmatprep.subr.bf16.mxu0 0
    %378 = vmatpush2.bf16.msra.mxu0 0
    %379 = vmatprep.subr.bf16.mxu0 0
    %380 = vmatpush2.bf16.msra.mxu0 0
    %381 = vmatprep.subr.bf16.mxu0 0
    %382 = vmatpush2.bf16.msra.mxu0 0
    %383 = vmatprep.mubr.bf16.mxu0 0
    %384 = vmatmul.mubr.bf16.gmra.mxu0 %v171
    %v385 = vpop.f32.mrf.mxu0
    %v386 = vadd.f32 %v337, %v385
    %v387 = vpop.f32.mrf.mxu0
    %v388 = vpop.f32.mrf.mxu0
    %v389 = vadd.f32 %v337, %v388
    %v390 = vpop.f32.mrf.mxu0
    %391 = vdwg.mxu0
    %v392 = vpack.c.bf16 %v325, %v324
    %393 = vmatprep.subr.bf16.mxu0 0
    %394 = vmatpush1.bf16.msra.mxu0 0
    %395 = vmatprep.subr.bf16.mxu0 0
    %396 = vmatpush1.bf16.msra.mxu0 0
    %397 = vmatprep.subr.bf16.mxu0 0
    %398 = vmatpush1.bf16.msra.mxu0 0
    %399 = vmatprep.subr.bf16.mxu0 0
    %400 = vmatpush1.bf16.msra.mxu0 0
    %401 = vmatprep.subr.bf16.mxu0 0
    %402 = vmatpush1.bf16.msra.mxu0 0
    %403 = vmatprep.subr.bf16.mxu0 0
    %404 = vmatpush1.bf16.msra.mxu0 0
    %405 = vmatprep.subr.bf16.mxu0 0
    %406 = vmatpush1.bf16.msra.mxu0 0
    %407 = vmatprep.subr.bf16.mxu0 0
    %408 = vmatpush1.bf16.msra.mxu0 %v392
    %409 = vmatprep.subr.bf16.mxu0 0
    %410 = vmatpush2.bf16.msra.mxu0 0
    %411 = vmatprep.subr.bf16.mxu0 0
    %412 = vmatpush2.bf16.msra.mxu0 0
    %413 = vmatprep.subr.bf16.mxu0 0
    %414 = vmatpush2.bf16.msra.mxu0 0
    %415 = vmatprep.subr.bf16.mxu0 0
    %416 = vmatpush2.bf16.msra.mxu0 0
    %417 = vmatprep.subr.bf16.mxu0 0
    %418 = vmatpush2.bf16.msra.mxu0 0
    %419 = vmatprep.subr.bf16.mxu0 0
    %420 = vmatpush2.bf16.msra.mxu0 0
    %421 = vmatprep.subr.bf16.mxu0 0
    %422 = vmatpush2.bf16.msra.mxu0 0
    %423 = vmatprep.subr.bf16.mxu0 0
    %424 = vmatpush2.bf16.msra.mxu0 0
    %425 = vmatprep.mubr.bf16.mxu0 0
    %426 = vmatmul.mubr.bf16.gmra.mxu0 %v220
    %v427 = vpop.f32.mrf.mxu0
    %v428 = vadd.f32 0.0, %v427
    %v429 = vpop.f32.mrf.mxu0
    %v430 = vpop.f32.mrf.mxu0
    %v431 = vadd.f32 0.0, %v430
    %v432 = vpop.f32.mrf.mxu0
    %433 = vdwg.mxu0
    %v434 = vpack.c.bf16 %v431, %v428
    %v435 = vld [vmem:[#allocation4] sm:$0xf]
    %v436 = vld [vmem:[#allocation4 + $0x4] sm:$0xf]
    %v437 = vld [vmem:[#allocation4 + $0x8] sm:$0xf]
    %v438 = vld [vmem:[#allocation4 + $0xc] sm:$0xf]
    %v439 = vld [vmem:[#allocation4 + $0x10] sm:$0xf]
    %v440 = vld [vmem:[#allocation4 + $0x14] sm:$0xf]
    %v441 = vld [vmem:[#allocation4 + $0x18] sm:$0xf]
    %v442 = vld [vmem:[#allocation4 + $0x1c] sm:$0xf]
    %v443 = vld [vmem:[#allocation4 + $0x20] sm:$0xf]
    %v444 = vld [vmem:[#allocation4 + $0x24] sm:$0xf]
    %v445 = vld [vmem:[#allocation4 + $0x28] sm:$0xf]
    %v446 = vld [vmem:[#allocation4 + $0x2c] sm:$0xf]
    %v447 = vld [vmem:[#allocation4 + $0x30] sm:$0xf]
    %v448 = vld [vmem:[#allocation4 + $0x34] sm:$0xf]
    %v449 = vld [vmem:[#allocation4 + $0x38] sm:$0xf]
    %v450 = vld [vmem:[#allocation4 + $0x3c] sm:$0xf]
    %v467 = vunpack.c.l.b16 %v435
    %v468 = vunpack.c.l.b16 %v436
    %v469 = vunpack.c.l.b16 %v437
    %v470 = vunpack.c.l.b16 %v438
    %v471 = vunpack.c.l.b16 %v439
    %v472 = vunpack.c.l.b16 %v440
    %v473 = vunpack.c.l.b16 %v441
    %v474 = vunpack.c.l.b16 %v442
    %v475 = vunpack.c.l.b16 %v443
    %v476 = vunpack.c.l.b16 %v444
    %v477 = vunpack.c.l.b16 %v445
    %v478 = vunpack.c.l.b16 %v446
    %v479 = vunpack.c.l.b16 %v447
    %v480 = vunpack.c.l.b16 %v448
    %v481 = vunpack.c.l.b16 %v449
    %v482 = vunpack.c.l.b16 %v450
    %v483 = vpack.c.b16 %v468, %v467
    %v484 = vpack.c.b16 %v470, %v469
    %v485 = vpack.c.b16 %v472, %v471
    %v486 = vpack.c.b16 %v474, %v473
    %v487 = vpack.c.b16 %v476, %v475
    %v488 = vpack.c.b16 %v478, %v477
    %v489 = vpack.c.b16 %v480, %v479
    %v490 = vpack.c.b16 %v482, %v481
    %499 = vmatprep.subr.bf16.mxu0 0
    %500 = vmatpush1.bf16.msra.mxu0 %v490
    %501 = vmatprep.subr.bf16.mxu0 0
    %502 = vmatpush1.bf16.msra.mxu0 %v489
    %503 = vmatprep.subr.bf16.mxu0 0
    %504 = vmatpush1.bf16.msra.mxu0 %v488
    %505 = vmatprep.subr.bf16.mxu0 0
    %506 = vmatpush1.bf16.msra.mxu0 %v487
    %507 = vmatprep.subr.bf16.mxu0 0
    %508 = vmatpush1.bf16.msra.mxu0 %v486
    %509 = vmatprep.subr.bf16.mxu0 0
    %510 = vmatpush1.bf16.msra.mxu0 %v485
    %511 = vmatprep.subr.bf16.mxu0 0
    %512 = vmatpush1.bf16.msra.mxu0 %v484
    %513 = vmatprep.subr.bf16.mxu0 0
    %514 = vmatpush1.bf16.msra.mxu0 %v483
    %515 = vmatprep.subr.bf16.mxu0 0
    %516 = vmatpush2.bf16.msra.mxu0 0
    %517 = vmatprep.subr.bf16.mxu0 0
    %518 = vmatpush2.bf16.msra.mxu0 0
    %519 = vmatprep.subr.bf16.mxu0 0
    %520 = vmatpush2.bf16.msra.mxu0 0
    %521 = vmatprep.subr.bf16.mxu0 0
    %522 = vmatpush2.bf16.msra.mxu0 0
    %523 = vmatprep.subr.bf16.mxu0 0
    %524 = vmatpush2.bf16.msra.mxu0 0
    %525 = vmatprep.subr.bf16.mxu0 0
    %526 = vmatpush2.bf16.msra.mxu0 0
    %527 = vmatprep.subr.bf16.mxu0 0
    %528 = vmatpush2.bf16.msra.mxu0 0
    %529 = vmatprep.subr.bf16.mxu0 0
    %530 = vmatpush2.bf16.msra.mxu0 0
    %531 = vmatprep.mubr.bf16.mxu0 0
    %532 = vmatmul.mubr.bf16.gmra.mxu0 %v434
    %v533 = vpop.f32.mrf.mxu0
    %v534 = vadd.f32 %v386, %v533
    %v535 = vpop.f32.mrf.mxu0
    %v536 = vpop.f32.mrf.mxu0
    %v537 = vadd.f32 %v389, %v536
    %v538 = vpop.f32.mrf.mxu0
    %539 = vdwg.mxu0
    %v540 = vmax.f32 %v534, 0.0
    %v541 = vmax.f32 %v537, 0.0
    %v542 = vpack.c.bf16 %v541, %v540
    %v543 = vld [vmem:[%s8] sm:$0xf]
    %v544 = vld [vmem:[%s8 + $0x4] sm:$0xf]
    %v545 = vld [vmem:[%s8 + $0x8] sm:$0xf]
    %v546 = vld [vmem:[%s8 + $0xc] sm:$0xf]
    %v547 = vld [vmem:[%s8 + $0x10] sm:$0xf]
    %v548 = vld [vmem:[%s8 + $0x14] sm:$0xf]
    %v549 = vld [vmem:[%s8 + $0x18] sm:$0xf]
    %v550 = vld [vmem:[%s8 + $0x1c] sm:$0xf]
    %v551 = vld [vmem:[%s8 + $0x20] sm:$0xf]
    %v552 = vld [vmem:[%s8 + $0x24] sm:$0xf]
    %v553 = vld [vmem:[%s8 + $0x28] sm:$0xf]
    %v554 = vld [vmem:[%s8 + $0x2c] sm:$0xf]
    %v555 = vld [vmem:[%s8 + $0x30] sm:$0xf]
    %v556 = vld [vmem:[%s8 + $0x34] sm:$0xf]
    %v557 = vld [vmem:[%s8 + $0x38] sm:$0xf]
    %v558 = vld [vmem:[%s8 + $0x3c] sm:$0xf]
    %v575 = vunpack.c.l.b16 %v543
    %v576 = vunpack.c.l.b16 %v544
    %v577 = vunpack.c.l.b16 %v545
    %v578 = vunpack.c.l.b16 %v546
    %v579 = vunpack.c.l.b16 %v547
    %v580 = vunpack.c.l.b16 %v548
    %v581 = vunpack.c.l.b16 %v549
    %v582 = vunpack.c.l.b16 %v550
    %v583 = vunpack.c.l.b16 %v551
    %v584 = vunpack.c.l.b16 %v552
    %v585 = vunpack.c.l.b16 %v553
    %v586 = vunpack.c.l.b16 %v554
    %v587 = vunpack.c.l.b16 %v555
    %v588 = vunpack.c.l.b16 %v556
    %v589 = vunpack.c.l.b16 %v557
    %v590 = vunpack.c.l.b16 %v558
    %v591 = vpack.c.b16 %v576, %v575
    %v592 = vpack.c.b16 %v578, %v577
    %v593 = vpack.c.b16 %v580, %v579
    %v594 = vpack.c.b16 %v582, %v581
    %v595 = vpack.c.b16 %v584, %v583
    %v596 = vpack.c.b16 %v586, %v585
    %v597 = vpack.c.b16 %v588, %v587
    %v598 = vpack.c.b16 %v590, %v589
    %607 = vmatprep.subr.bf16.mxu0 0
    %608 = vmatpush1.bf16.msra.mxu0 %v598
    %609 = vmatprep.subr.bf16.mxu0 0
    %610 = vmatpush1.bf16.msra.mxu0 %v597
    %611 = vmatprep.subr.bf16.mxu0 0
    %612 = vmatpush1.bf16.msra.mxu0 %v596
    %613 = vmatprep.subr.bf16.mxu0 0
    %614 = vmatpush1.bf16.msra.mxu0 %v595
    %615 = vmatprep.subr.bf16.mxu0 0
    %616 = vmatpush1.bf16.msra.mxu0 %v594
    %617 = vmatprep.subr.bf16.mxu0 0
    %618 = vmatpush1.bf16.msra.mxu0 %v593
    %619 = vmatprep.subr.bf16.mxu0 0
    %620 = vmatpush1.bf16.msra.mxu0 %v592
    %621 = vmatprep.subr.bf16.mxu0 0
    %622 = vmatpush1.bf16.msra.mxu0 %v591
    %623 = vmatprep.subr.bf16.mxu0 0
    %624 = vmatpush2.bf16.msra.mxu0 0
    %625 = vmatprep.subr.bf16.mxu0 0
    %626 = vmatpush2.bf16.msra.mxu0 0
    %627 = vmatprep.subr.bf16.mxu0 0
    %628 = vmatpush2.bf16.msra.mxu0 0
    %629 = vmatprep.subr.bf16.mxu0 0
    %630 = vmatpush2.bf16.msra.mxu0 0
    %631 = vmatprep.subr.bf16.mxu0 0
    %632 = vmatpush2.bf16.msra.mxu0 0
    %633 = vmatprep.subr.bf16.mxu0 0
    %634 = vmatpush2.bf16.msra.mxu0 0
    %635 = vmatprep.subr.bf16.mxu0 0
    %636 = vmatpush2.bf16.msra.mxu0 0
    %637 = vmatprep.subr.bf16.mxu0 0
    %638 = vmatpush2.bf16.msra.mxu0 0
    %639 = vmatprep.mubr.bf16.mxu0 0
    %640 = vmatmul.mubr.bf16.gmra.mxu0 %v542
    %v641 = vpop.f32.mrf.mxu0
    %v642 = vadd.f32 0.0, %v641
    %v643 = vpop.f32.mrf.mxu0
    %v644 = vpop.f32.mrf.mxu0
    %v645 = vadd.f32 0.0, %v644
    %v646 = vpop.f32.mrf.mxu0
    %647 = vdwg.mxu0
    %v648 = vmax.f32 %v642, 0.0
    %v649 = vmax.f32 %v645, 0.0
    %v650 = vpack.c.bf16 %v649, %v648
    %s651 = scalar_lea.vmem %s4, 32
    %v652 = vld [vmem:[%s651] sm:$0xf]
    %v653 = vld [vmem:[%s651 + $0x4] sm:$0xf]
    %v654 = vld [vmem:[%s651 + $0x8] sm:$0xf]
    %v655 = vld [vmem:[%s651 + $0xc] sm:$0xf]
    %s656 = scalar_lea.vmem %s5, 2
    %v657 = vld [vmem:[%s656] sm:$0x1]
    %v659 = vlaneseq
    %v660 = vshrl.u32 %v659, 7
    %v661 = vsub.s32 0, %v660
    %v662 = vrot.slane %v657, %v661
    %v668 = vunpack.c.l.b16 %v652
    %v669 = vunpack.c.l.b16 %v653
    %v670 = vunpack.c.l.b16 %v654
    %v671 = vunpack.c.l.b16 %v655
    %v672 = vpack.c.b16 %v669, %v668
    %v673 = vpack.c.b16 %v671, %v670
    %v677 = vsel %vm169, %v650, 0
    %679 = vmatprep.subr.bf16.mxu0 0
    %680 = vmatpush1.bf16.msra.mxu0 0
    %681 = vmatprep.subr.bf16.mxu0 0
    %682 = vmatpush1.bf16.msra.mxu0 0
    %683 = vmatprep.subr.bf16.mxu0 0
    %684 = vmatpush1.bf16.msra.mxu0 0
    %685 = vmatprep.subr.bf16.mxu0 0
    %686 = vmatpush1.bf16.msra.mxu0 0
    %687 = vmatprep.subr.bf16.mxu0 0
    %688 = vmatpush1.bf16.msra.mxu0 0
    %689 = vmatprep.subr.bf16.mxu0 0
    %690 = vmatpush1.bf16.msra.mxu0 0
    %691 = vmatprep.subr.bf16.mxu0 0
    %692 = vmatpush1.bf16.msra.mxu0 %v673
    %693 = vmatprep.subr.bf16.mxu0 0
    %694 = vmatpush1.bf16.msra.mxu0 %v672
    %695 = vmatprep.subr.bf16.mxu0 0
    %696 = vmatpush2.bf16.msra.mxu0 0
    %697 = vmatprep.subr.bf16.mxu0 0
    %698 = vmatpush2.bf16.msra.mxu0 0
    %699 = vmatprep.subr.bf16.mxu0 0
    %700 = vmatpush2.bf16.msra.mxu0 0
    %701 = vmatprep.subr.bf16.mxu0 0
    %702 = vmatpush2.bf16.msra.mxu0 0
    %703 = vmatprep.subr.bf16.mxu0 0
    %704 = vmatpush2.bf16.msra.mxu0 0
    %705 = vmatprep.subr.bf16.mxu0 0
    %706 = vmatpush2.bf16.msra.mxu0 0
    %707 = vmatprep.subr.bf16.mxu0 0
    %708 = vmatpush2.bf16.msra.mxu0 0
    %709 = vmatprep.subr.bf16.mxu0 0
    %710 = vmatpush2.bf16.msra.mxu0 0
    %711 = vmatprep.mubr.bf16.mxu0 0
    %712 = vmatmul.mubr.bf16.gmra.mxu0 %v677
    %v713 = vpop.f32.mrf.mxu0
    %v714 = vadd.f32 %v662, %v713
    %v715 = vpop.f32.mrf.mxu0
    %v716 = vpop.f32.mrf.mxu0
    %v717 = vadd.f32 %v662, %v716
    %v718 = vpop.f32.mrf.mxu0
    %719 = vdwg.mxu0
    %720 = vmatprep.subr.bf16.mxu0 0
    %721 = vmatpush1.bf16.msra.mxu0 0
    %722 = vmatprep.subr.bf16.mxu0 0
    %723 = vmatpush1.bf16.msra.mxu0 0
    %724 = vmatprep.subr.bf16.mxu0 0
    %725 = vmatpush1.bf16.msra.mxu0 0
    %726 = vmatprep.subr.bf16.mxu0 0
    %727 = vmatpush1.bf16.msra.mxu0 0
    %728 = vmatprep.subr.bf16.mxu0 0
    %729 = vmatpush1.bf16.msra.mxu0 0
    %730 = vmatprep.subr.bf16.mxu0 0
    %731 = vmatpush1.bf16.msra.mxu0 0
    %732 = vmatprep.subr.bf16.mxu0 0
    %733 = vmatpush1.bf16.msra.mxu0 0
    %734 = vmatprep.subr.bf16.mxu0 0
    %735 = vmatpush1.bf16.msra.mxu0 %v650
    %736 = vmatprep.subr.bf16.mxu0 0
    %737 = vmatpush2.bf16.msra.mxu0 0
    %738 = vmatprep.subr.bf16.mxu0 0
    %739 = vmatpush2.bf16.msra.mxu0 0
    %740 = vmatprep.subr.bf16.mxu0 0
    %741 = vmatpush2.bf16.msra.mxu0 0
    %742 = vmatprep.subr.bf16.mxu0 0
    %743 = vmatpush2.bf16.msra.mxu0 0
    %744 = vmatprep.subr.bf16.mxu0 0
    %745 = vmatpush2.bf16.msra.mxu0 0
    %746 = vmatprep.subr.bf16.mxu0 0
    %747 = vmatpush2.bf16.msra.mxu0 0
    %748 = vmatprep.subr.bf16.mxu0 0
    %749 = vmatpush2.bf16.msra.mxu0 0
    %750 = vmatprep.subr.bf16.mxu0 0
    %751 = vmatpush2.bf16.msra.mxu0 0
    %752 = vmatprep.mubr.bf16.mxu0 0
    %753 = vmatmul.mubr.bf16.gmra.mxu0 %v220
    %v754 = vpop.f32.mrf.mxu0
    %v755 = vadd.f32 0.0, %v754
    %v756 = vpop.f32.mrf.mxu0
    %v757 = vpop.f32.mrf.mxu0
    %v758 = vadd.f32 0.0, %v757
    %v759 = vpop.f32.mrf.mxu0
    %760 = vdwg.mxu0
    %v761 = vpack.c.bf16 %v758, %v755
    %s762 = scalar_lea.vmem %s6, 16
    %v763 = vld [vmem:[%s762] sm:$0xf]
    %v764 = vld [vmem:[%s762 + $0x4] sm:$0xf]
    %v765 = vld [vmem:[%s762 + $0x8] sm:$0xf]
    %v766 = vld [vmem:[%s762 + $0xc] sm:$0xf]
    %v771 = vunpack.c.l.b16 %v763
    %v772 = vunpack.c.l.b16 %v764
    %v773 = vunpack.c.l.b16 %v765
    %v774 = vunpack.c.l.b16 %v766
    %v775 = vpack.c.b16 %v772, %v771
    %v776 = vpack.c.b16 %v774, %v773
    %v780 = vsel %vm169, %v761, 0
    %782 = vmatprep.subr.bf16.mxu0 0
    %783 = vmatpush1.bf16.msra.mxu0 0
    %784 = vmatprep.subr.bf16.mxu0 0
    %785 = vmatpush1.bf16.msra.mxu0 0
    %786 = vmatprep.subr.bf16.mxu0 0
    %787 = vmatpush1.bf16.msra.mxu0 0
    %788 = vmatprep.subr.bf16.mxu0 0
    %789 = vmatpush1.bf16.msra.mxu0 0
    %790 = vmatprep.subr.bf16.mxu0 0
    %791 = vmatpush1.bf16.msra.mxu0 0
    %792 = vmatprep.subr.bf16.mxu0 0
    %793 = vmatpush1.bf16.msra.mxu0 0
    %794 = vmatprep.subr.bf16.mxu0 0
    %795 = vmatpush1.bf16.msra.mxu0 %v776
    %796 = vmatprep.subr.bf16.mxu0 0
    %797 = vmatpush1.bf16.msra.mxu0 %v775
    %798 = vmatprep.subr.bf16.mxu0 0
    %799 = vmatpush2.bf16.msra.mxu0 0
    %800 = vmatprep.subr.bf16.mxu0 0
    %801 = vmatpush2.bf16.msra.mxu0 0
    %802 = vmatprep.subr.bf16.mxu0 0
    %803 = vmatpush2.bf16.msra.mxu0 0
    %804 = vmatprep.subr.bf16.mxu0 0
    %805 = vmatpush2.bf16.msra.mxu0 0
    %806 = vmatprep.subr.bf16.mxu0 0
    %807 = vmatpush2.bf16.msra.mxu0 0
    %808 = vmatprep.subr.bf16.mxu0 0
    %809 = vmatpush2.bf16.msra.mxu0 0
    %810 = vmatprep.subr.bf16.mxu0 0
    %811 = vmatpush2.bf16.msra.mxu0 0
    %812 = vmatprep.subr.bf16.mxu0 0
    %813 = vmatpush2.bf16.msra.mxu0 0
    %814 = vmatprep.mubr.bf16.mxu0 0
    %815 = vmatmul.mubr.bf16.gmra.mxu0 %v780
    %v816 = vpop.f32.mrf.mxu0
    %v817 = vadd.f32 %v714, %v816
    %v818 = vpop.f32.mrf.mxu0
    %v819 = vpop.f32.mrf.mxu0
    %v820 = vadd.f32 %v717, %v819
    %v821 = vpop.f32.mrf.mxu0
    %822 = vdwg.mxu0
    %v823 = vmax.f32 %v817, 0.0
    %v824 = vmax.f32 %v820, 0.0
    %s825 = scalar_lea.vmem %s4, 48
    %v826 = vld [vmem:[%s825] sm:$0xf]
    %v827 = vld [vmem:[%s825 + $0x4] sm:$0xf]
    %v828 = vld [vmem:[%s825 + $0x8] sm:$0xf]
    %v829 = vld [vmem:[%s825 + $0xc] sm:$0xf]
    %s830 = scalar_lea.vmem %s5, 3
    %v831 = vld [vmem:[%s830] sm:$0x1]
    %v833 = vlaneseq
    %v834 = vshrl.u32 %v833, 7
    %v835 = vsub.s32 0, %v834
    %v836 = vrot.slane %v831, %v835
    %v842 = vunpack.c.l.b16 %v826
    %v843 = vunpack.c.l.b16 %v827
    %v844 = vunpack.c.l.b16 %v828
    %v845 = vunpack.c.l.b16 %v829
    %v846 = vpack.c.b16 %v843, %v842
    %v847 = vpack.c.b16 %v845, %v844
    %850 = vmatprep.subr.bf16.mxu0 0
    %851 = vmatpush1.bf16.msra.mxu0 0
    %852 = vmatprep.subr.bf16.mxu0 0
    %853 = vmatpush1.bf16.msra.mxu0 0
    %854 = vmatprep.subr.bf16.mxu0 0
    %855 = vmatpush1.bf16.msra.mxu0 0
    %856 = vmatprep.subr.bf16.mxu0 0
    %857 = vmatpush1.bf16.msra.mxu0 0
    %858 = vmatprep.subr.bf16.mxu0 0
    %859 = vmatpush1.bf16.msra.mxu0 0
    %860 = vmatprep.subr.bf16.mxu0 0
    %861 = vmatpush1.bf16.msra.mxu0 0
    %862 = vmatprep.subr.bf16.mxu0 0
    %863 = vmatpush1.bf16.msra.mxu0 %v847
    %864 = vmatprep.subr.bf16.mxu0 0
    %865 = vmatpush1.bf16.msra.mxu0 %v846
    %866 = vmatprep.subr.bf16.mxu0 0
    %867 = vmatpush2.bf16.msra.mxu0 0
    %868 = vmatprep.subr.bf16.mxu0 0
    %869 = vmatpush2.bf16.msra.mxu0 0
    %870 = vmatprep.subr.bf16.mxu0 0
    %871 = vmatpush2.bf16.msra.mxu0 0
    %872 = vmatprep.subr.bf16.mxu0 0
    %873 = vmatpush2.bf16.msra.mxu0 0
    %874 = vmatprep.subr.bf16.mxu0 0
    %875 = vmatpush2.bf16.msra.mxu0 0
    %876 = vmatprep.subr.bf16.mxu0 0
    %877 = vmatpush2.bf16.msra.mxu0 0
    %878 = vmatprep.subr.bf16.mxu0 0
    %879 = vmatpush2.bf16.msra.mxu0 0
    %880 = vmatprep.subr.bf16.mxu0 0
    %881 = vmatpush2.bf16.msra.mxu0 0
    %882 = vmatprep.mubr.bf16.mxu0 0
    %883 = vmatmul.mubr.bf16.gmra.mxu0 %v677
    %v884 = vpop.f32.mrf.mxu0
    %v885 = vadd.f32 %v836, %v884
    %v886 = vpop.f32.mrf.mxu0
    %v887 = vpop.f32.mrf.mxu0
    %v888 = vadd.f32 %v836, %v887
    %v889 = vpop.f32.mrf.mxu0
    %890 = vdwg.mxu0
    %v891 = vpack.c.bf16 %v824, %v823
    %892 = vmatprep.subr.bf16.mxu0 0
    %893 = vmatpush1.bf16.msra.mxu0 0
    %894 = vmatprep.subr.bf16.mxu0 0
    %895 = vmatpush1.bf16.msra.mxu0 0
    %896 = vmatprep.subr.bf16.mxu0 0
    %897 = vmatpush1.bf16.msra.mxu0 0
    %898 = vmatprep.subr.bf16.mxu0 0
    %899 = vmatpush1.bf16.msra.mxu0 0
    %900 = vmatprep.subr.bf16.mxu0 0
    %901 = vmatpush1.bf16.msra.mxu0 0
    %902 = vmatprep.subr.bf16.mxu0 0
    %903 = vmatpush1.bf16.msra.mxu0 0
    %904 = vmatprep.subr.bf16.mxu0 0
    %905 = vmatpush1.bf16.msra.mxu0 0
    %906 = vmatprep.subr.bf16.mxu0 0
    %907 = vmatpush1.bf16.msra.mxu0 %v891
    %908 = vmatprep.subr.bf16.mxu0 0
    %909 = vmatpush2.bf16.msra.mxu0 0
    %910 = vmatprep.subr.bf16.mxu0 0
    %911 = vmatpush2.bf16.msra.mxu0 0
    %912 = vmatprep.subr.bf16.mxu0 0
    %913 = vmatpush2.bf16.msra.mxu0 0
    %914 = vmatprep.subr.bf16.mxu0 0
    %915 = vmatpush2.bf16.msra.mxu0 0
    %916 = vmatprep.subr.bf16.mxu0 0
    %917 = vmatpush2.bf16.msra.mxu0 0
    %918 = vmatprep.subr.bf16.mxu0 0
    %919 = vmatpush2.bf16.msra.mxu0 0
    %920 = vmatprep.subr.bf16.mxu0 0
    %921 = vmatpush2.bf16.msra.mxu0 0
    %922 = vmatprep.subr.bf16.mxu0 0
    %923 = vmatpush2.bf16.msra.mxu0 0
    %924 = vmatprep.mubr.bf16.mxu0 0
    %925 = vmatmul.mubr.bf16.gmra.mxu0 %v220
    %v926 = vpop.f32.mrf.mxu0
    %v927 = vadd.f32 0.0, %v926
    %v928 = vpop.f32.mrf.mxu0
    %v929 = vpop.f32.mrf.mxu0
    %v930 = vadd.f32 0.0, %v929
    %v931 = vpop.f32.mrf.mxu0
    %932 = vdwg.mxu0
    %v933 = vpack.c.bf16 %v930, %v927
    %s934 = scalar_lea.vmem [#allocation4], 64
    %v935 = vld [vmem:[%s934] sm:$0xf]
    %v936 = vld [vmem:[%s934 + $0x4] sm:$0xf]
    %v937 = vld [vmem:[%s934 + $0x8] sm:$0xf]
    %v938 = vld [vmem:[%s934 + $0xc] sm:$0xf]
    %v939 = vld [vmem:[%s934 + $0x10] sm:$0xf]
    %v940 = vld [vmem:[%s934 + $0x14] sm:$0xf]
    %v941 = vld [vmem:[%s934 + $0x18] sm:$0xf]
    %v942 = vld [vmem:[%s934 + $0x1c] sm:$0xf]
    %v943 = vld [vmem:[%s934 + $0x20] sm:$0xf]
    %v944 = vld [vmem:[%s934 + $0x24] sm:$0xf]
    %v945 = vld [vmem:[%s934 + $0x28] sm:$0xf]
    %v946 = vld [vmem:[%s934 + $0x2c] sm:$0xf]
    %v947 = vld [vmem:[%s934 + $0x30] sm:$0xf]
    %v948 = vld [vmem:[%s934 + $0x34] sm:$0xf]
    %v949 = vld [vmem:[%s934 + $0x38] sm:$0xf]
    %v950 = vld [vmem:[%s934 + $0x3c] sm:$0xf]
    %v967 = vunpack.c.l.b16 %v935
    %v968 = vunpack.c.l.b16 %v936
    %v969 = vunpack.c.l.b16 %v937
    %v970 = vunpack.c.l.b16 %v938
    %v971 = vunpack.c.l.b16 %v939
    %v972 = vunpack.c.l.b16 %v940
    %v973 = vunpack.c.l.b16 %v941
    %v974 = vunpack.c.l.b16 %v942
    %v975 = vunpack.c.l.b16 %v943
    %v976 = vunpack.c.l.b16 %v944
    %v977 = vunpack.c.l.b16 %v945
    %v978 = vunpack.c.l.b16 %v946
    %v979 = vunpack.c.l.b16 %v947
    %v980 = vunpack.c.l.b16 %v948
    %v981 = vunpack.c.l.b16 %v949
    %v982 = vunpack.c.l.b16 %v950
    %v983 = vpack.c.b16 %v968, %v967
    %v984 = vpack.c.b16 %v970, %v969
    %v985 = vpack.c.b16 %v972, %v971
    %v986 = vpack.c.b16 %v974, %v973
    %v987 = vpack.c.b16 %v976, %v975
    %v988 = vpack.c.b16 %v978, %v977
    %v989 = vpack.c.b16 %v980, %v979
    %v990 = vpack.c.b16 %v982, %v981
    %999 = vmatprep.subr.bf16.mxu0 0
    %1000 = vmatpush1.bf16.msra.mxu0 %v990
    %1001 = vmatprep.subr.bf16.mxu0 0
    %1002 = vmatpush1.bf16.msra.mxu0 %v989
    %1003 = vmatprep.subr.bf16.mxu0 0
    %1004 = vmatpush1.bf16.msra.mxu0 %v988
    %1005 = vmatprep.subr.bf16.mxu0 0
    %1006 = vmatpush1.bf16.msra.mxu0 %v987
    %1007 = vmatprep.subr.bf16.mxu0 0
    %1008 = vmatpush1.bf16.msra.mxu0 %v986
    %1009 = vmatprep.subr.bf16.mxu0 0
    %1010 = vmatpush1.bf16.msra.mxu0 %v985
    %1011 = vmatprep.subr.bf16.mxu0 0
    %1012 = vmatpush1.bf16.msra.mxu0 %v984
    %1013 = vmatprep.subr.bf16.mxu0 0
    %1014 = vmatpush1.bf16.msra.mxu0 %v983
    %1015 = vmatprep.subr.bf16.mxu0 0
    %1016 = vmatpush2.bf16.msra.mxu0 0
    %1017 = vmatprep.subr.bf16.mxu0 0
    %1018 = vmatpush2.bf16.msra.mxu0 0
    %1019 = vmatprep.subr.bf16.mxu0 0
    %1020 = vmatpush2.bf16.msra.mxu0 0
    %1021 = vmatprep.subr.bf16.mxu0 0
    %1022 = vmatpush2.bf16.msra.mxu0 0
    %1023 = vmatprep.subr.bf16.mxu0 0
    %1024 = vmatpush2.bf16.msra.mxu0 0
    %1025 = vmatprep.subr.bf16.mxu0 0
    %1026 = vmatpush2.bf16.msra.mxu0 0
    %1027 = vmatprep.subr.bf16.mxu0 0
    %1028 = vmatpush2.bf16.msra.mxu0 0
    %1029 = vmatprep.subr.bf16.mxu0 0
    %1030 = vmatpush2.bf16.msra.mxu0 0
    %1031 = vmatprep.mubr.bf16.mxu0 0
    %1032 = vmatmul.mubr.bf16.gmra.mxu0 %v933
    %v1033 = vpop.f32.mrf.mxu0
    %v1034 = vadd.f32 %v885, %v1033
    %v1035 = vpop.f32.mrf.mxu0
    %v1036 = vpop.f32.mrf.mxu0
    %v1037 = vadd.f32 %v888, %v1036
    %v1038 = vpop.f32.mrf.mxu0
    %1039 = vdwg.mxu0
    %v1040 = vmax.f32 %v1034, 0.0
    %v1041 = vmax.f32 %v1037, 0.0
    %v1042 = vpack.c.bf16 %v1041, %v1040
    %1043 = vmatprep.subr.bf16.mxu0 0
    %1044 = vmatpush1.bf16.msra.mxu0 %v598
    %1045 = vmatprep.subr.bf16.mxu0 0
    %1046 = vmatpush1.bf16.msra.mxu0 %v597
    %1047 = vmatprep.subr.bf16.mxu0 0
    %1048 = vmatpush1.bf16.msra.mxu0 %v596
    %1049 = vmatprep.subr.bf16.mxu0 0
    %1050 = vmatpush1.bf16.msra.mxu0 %v595
    %1051 = vmatprep.subr.bf16.mxu0 0
    %1052 = vmatpush1.bf16.msra.mxu0 %v594
    %1053 = vmatprep.subr.bf16.mxu0 0
    %1054 = vmatpush1.bf16.msra.mxu0 %v593
    %1055 = vmatprep.subr.bf16.mxu0 0
    %1056 = vmatpush1.bf16.msra.mxu0 %v592
    %1057 = vmatprep.subr.bf16.mxu0 0
    %1058 = vmatpush1.bf16.msra.mxu0 %v591
    %1059 = vmatprep.subr.bf16.mxu0 0
    %1060 = vmatpush2.bf16.msra.mxu0 0
    %1061 = vmatprep.subr.bf16.mxu0 0
    %1062 = vmatpush2.bf16.msra.mxu0 0
    %1063 = vmatprep.subr.bf16.mxu0 0
    %1064 = vmatpush2.bf16.msra.mxu0 0
    %1065 = vmatprep.subr.bf16.mxu0 0
    %1066 = vmatpush2.bf16.msra.mxu0 0
    %1067 = vmatprep.subr.bf16.mxu0 0
    %1068 = vmatpush2.bf16.msra.mxu0 0
    %1069 = vmatprep.subr.bf16.mxu0 0
    %1070 = vmatpush2.bf16.msra.mxu0 0
    %1071 = vmatprep.subr.bf16.mxu0 0
    %1072 = vmatpush2.bf16.msra.mxu0 0
    %1073 = vmatprep.subr.bf16.mxu0 0
    %1074 = vmatpush2.bf16.msra.mxu0 0
    %1075 = vmatprep.mubr.bf16.mxu0 0
    %1076 = vmatmul.mubr.bf16.gmra.mxu0 %v1042
    %v1077 = vpop.f32.mrf.mxu0
    %v1078 = vadd.f32 0.0, %v1077
    %v1079 = vpop.f32.mrf.mxu0
    %v1080 = vpop.f32.mrf.mxu0
    %v1081 = vadd.f32 0.0, %v1080
    %v1082 = vpop.f32.mrf.mxu0
    %1083 = vdwg.mxu0
    %v1084 = vmax.f32 %v1078, 0.0
    %v1085 = vmax.f32 %v1081, 0.0
    %v1086 = vpack.c.bf16 %v1085, %v1084
    %v1087 = vld [vmem:[#allocation6] sm:$0xf]
    %v1088 = vld [vmem:[#allocation6 + $0x4] sm:$0xf]
    %v1089 = vld [vmem:[#allocation6 + $0x8] sm:$0xf]
    %v1090 = vld [vmem:[#allocation6 + $0xc] sm:$0xf]
    %v1091 = vld [vmem:[%s10] sm:$0x1]
    %v1093 = vlaneseq
    %v1094 = vshrl.u32 %v1093, 7
    %v1095 = vsub.s32 0, %v1094
    %v1096 = vrot.slane %v1091, %v1095
    %v1102 = vunpack.c.l.b16 %v1087
    %v1103 = vunpack.c.l.b16 %v1088
    %v1104 = vunpack.c.l.b16 %v1089
    %v1105 = vunpack.c.l.b16 %v1090
    %v1106 = vpack.c.b16 %v1103, %v1102
    %v1107 = vpack.c.b16 %v1105, %v1104
    %v1111 = vsel %vm169, %v1086, 0
    %1113 = vmatprep.subr.bf16.mxu0 0
    %1114 = vmatpush1.bf16.msra.mxu0 0
    %1115 = vmatprep.subr.bf16.mxu0 0
    %1116 = vmatpush1.bf16.msra.mxu0 0
    %1117 = vmatprep.subr.bf16.mxu0 0
    %1118 = vmatpush1.bf16.msra.mxu0 0
    %1119 = vmatprep.subr.bf16.mxu0 0
    %1120 = vmatpush1.bf16.msra.mxu0 0
    %1121 = vmatprep.subr.bf16.mxu0 0
    %1122 = vmatpush1.bf16.msra.mxu0 0
    %1123 = vmatprep.subr.bf16.mxu0 0
    %1124 = vmatpush1.bf16.msra.mxu0 0
    %1125 = vmatprep.subr.bf16.mxu0 0
    %1126 = vmatpush1.bf16.msra.mxu0 %v1107
    %1127 = vmatprep.subr.bf16.mxu0 0
    %1128 = vmatpush1.bf16.msra.mxu0 %v1106
    %1129 = vmatprep.subr.bf16.mxu0 0
    %1130 = vmatpush2.bf16.msra.mxu0 0
    %1131 = vmatprep.subr.bf16.mxu0 0
    %1132 = vmatpush2.bf16.msra.mxu0 0
    %1133 = vmatprep.subr.bf16.mxu0 0
    %1134 = vmatpush2.bf16.msra.mxu0 0
    %1135 = vmatprep.subr.bf16.mxu0 0
    %1136 = vmatpush2.bf16.msra.mxu0 0
    %1137 = vmatprep.subr.bf16.mxu0 0
    %1138 = vmatpush2.bf16.msra.mxu0 0
    %1139 = vmatprep.subr.bf16.mxu0 0
    %1140 = vmatpush2.bf16.msra.mxu0 0
    %1141 = vmatprep.subr.bf16.mxu0 0
    %1142 = vmatpush2.bf16.msra.mxu0 0
    %1143 = vmatprep.subr.bf16.mxu0 0
    %1144 = vmatpush2.bf16.msra.mxu0 0
    %1145 = vmatprep.mubr.bf16.mxu0 0
    %1146 = vmatmul.mubr.bf16.gmra.mxu0 %v1111
    %v1147 = vpop.f32.mrf.mxu0
    %v1148 = vadd.f32 %v1096, %v1147
    %v1149 = vpop.f32.mrf.mxu0
    %v1150 = vpop.f32.mrf.mxu0
    %v1151 = vadd.f32 %v1096, %v1150
    %v1152 = vpop.f32.mrf.mxu0
    %1153 = vdwg.mxu0
    %1154 = vst [vmem:[%s11] sm:$0xff] %v1148
    %1155 = vst [vmem:[%s11 + $0x8] sm:$0xff] %v1151
    // Predicated region
    $region58: #{arma_net_forward.1} parent=1 // pred_check
      _
    $region59: #{arma_net_forward.1} parent=1 // pred_check_branch
      %1157 = sbr.rel (0) target = $region61
    $region60: #{arma_net_forward.1} parent=1 // pred_region
      _
    $region61: #{arma_net_forward.1} parent=1 // pred_fallthru
      _
    // Predicated region
    $region62: #{arma_net_forward.1} parent=1 // pred_check
      _
    $region63: #{arma_net_forward.1} parent=1 // pred_check_branch
      %1159 = sbr.rel (0) target = $region65
    $region64: #{arma_net_forward.1} parent=1 // pred_region
      _
    $region65: #{arma_net_forward.1} parent=1 // pred_fallthru
      _
    %1160 = vsyncpa [#allocation3], 1
    %1161 = vsyncpa [#allocation5], 1

</llo_original>
